<compile_context>
chip_gen: v7x
topology: tpu7x:2x2x1
jax: 0.10.0
libtpu: 0.0.40
codegen_flags: <defaults>
</compile_context>

<pallas_src>
import functools

import jax
import jax.numpy as jnp
from jax import lax
from jax.experimental import pallas as pl
from jax.experimental.pallas import tpu as pltpu


def _round_up(n, m):
    return ((n + m - 1) // m) * m


def _attention_kernel(x_ref, wq_ref, bq_ref, wk_ref, bk_ref, wv_ref, bv_ref,
                      o_ref, *, B, S, scale, use_bf16_matmul):
    # Whole problem in one invocation; X already folded to (B*S, E).
    x = x_ref[...]                                    # (B*S, E)

    # Biases read once (single invocation -> no per-iteration re-broadcast).
    bq = bq_ref[...]
    bk = bk_ref[...]
    bv = bv_ref[...]

    def mm(a, b):
        if use_bf16_matmul:
            a = a.astype(jnp.bfloat16)
            b = b.astype(jnp.bfloat16)
        return jnp.dot(a, b, preferred_element_type=jnp.float32)

    # Projections on the folded (B*S, E) rows — one tall-M matmul each.
    q = mm(x, wq_ref[...]) + bq                       # (B*S, Kp)
    k = mm(x, wk_ref[...]) + bk                       # (B*S, Kp)
    v = mm(x, wv_ref[...]) + bv                       # (B*S, Vp)

    # Fold the 1/sqrt(kdim) scale into Q (one pass over S x Kp, not S x S).
    q = q * scale

    Kp = q.shape[-1]
    Vp = v.shape[-1]
    qb = q.reshape(B, S, Kp)
    kb = k.reshape(B, S, Kp)
    vb = v.reshape(B, S, Vp)

    if use_bf16_matmul:
        qb = qb.astype(jnp.bfloat16)
        kb = kb.astype(jnp.bfloat16)

    # scores[b, i, j] = sum_d qb[b, i, d] * kb[b, j, d]  (no explicit transpose)
    scores = lax.dot_general(
        qb, kb,
        dimension_numbers=(((2,), (2,)), ((0,), (0,))),
        preferred_element_type=jnp.float32)           # (B, S, S)

    # Numerically stable softmax over the last axis, kept in f32.
    m = jnp.max(scores, axis=-1, keepdims=True)
    e = jnp.exp(scores - m)
    denom = jnp.sum(e, axis=-1, keepdims=True)
    p = e * pl.reciprocal(denom, approx=True)

    if use_bf16_matmul:
        p = p.astype(jnp.bfloat16)
        vb = vb.astype(jnp.bfloat16)

    # out[b, i, d] = sum_j p[b, i, j] * vb[b, j, d]
    out = lax.dot_general(
        p, vb,
        dimension_numbers=(((2,), (1,)), ((0,), (0,))),
        preferred_element_type=jnp.float32)           # (B, S, Vp)

    # Lane-dense store: last dim Vp is a multiple of 128.
    o_ref[...] = out.reshape(B * S, Vp).astype(o_ref.dtype)


def attention_forward(x, wq, bq, wk, bk, wv, bv, *, use_bf16_matmul=False):
    """x: (B, S, E); wq/wk: (E, kdim); wv: (E, vdim); biases (1, kdim/vdim)."""
    B, S, E = x.shape
    kdim = wq.shape[1]
    vdim = wv.shape[1]

    # Pad the projection output dims to a lane-dense multiple of 128.
    # Zero-padded Q/K columns cancel in Q K^T, zero-padded V columns produce
    # zero output columns that are sliced off below -> identical result.
    Kp = _round_up(kdim, 128)
    Vp = _round_up(vdim, 128)

    def pad_cols(a, target):
        return jnp.pad(a, ((0, 0), (0, target - a.shape[1])))

    wq_p, bq_p = pad_cols(wq, Kp), pad_cols(bq, Kp)
    wk_p, bk_p = pad_cols(wk, Kp), pad_cols(bk, Kp)
    wv_p, bv_p = pad_cols(wv, Vp), pad_cols(bv, Vp)

    x2d = x.reshape(B * S, E)

    kernel = functools.partial(
        _attention_kernel,
        B=B, S=S, scale=1.0 / (kdim ** 0.5),
        use_bf16_matmul=use_bf16_matmul)

    out2d = pl.pallas_call(
        kernel,
        out_shape=jax.ShapeDtypeStruct((B * S, Vp), x.dtype),
        grid=(1,),
        in_specs=[
            pl.BlockSpec((B * S, E), lambda i: (0, 0)),   # X (batch folded)
            pl.BlockSpec((E, Kp), lambda i: (0, 0)),      # W_Q
            pl.BlockSpec((1, Kp), lambda i: (0, 0)),      # b_Q
            pl.BlockSpec((E, Kp), lambda i: (0, 0)),      # W_K
            pl.BlockSpec((1, Kp), lambda i: (0, 0)),      # b_K
            pl.BlockSpec((E, Vp), lambda i: (0, 0)),      # W_V
            pl.BlockSpec((1, Vp), lambda i: (0, 0)),      # b_V
        ],
        out_specs=pl.BlockSpec((B * S, Vp), lambda i: (0, 0)),
        compiler_params=pltpu.CompilerParams(
            dimension_semantics=("arbitrary",)),
    )(x2d, wq_p, bq_p, wk_p, bk_p, wv_p, bv_p)

    # TODO(synk): for large S / B reintroduce a parallel query-tile grid axis
    # (>=2 for v7x's two TensorCores) and flash-style KV tiling with
    # vmem_limit_bytes derived for 64 MiB VMEM.
    return out2d[:, :vdim].reshape(B, S, vdim)


def reference_forward(x, wq, bq, wk, bk, wv, bv, kdim):
    q = x @ wq + bq
    k = x @ wk + bk
    v = x @ wv + bv
    scores = jnp.einsum("bqd,bkd->bqk", q, k) / (kdim ** 0.5)
    p = jax.nn.softmax(scores, axis=-1)
    return jnp.einsum("bqk,bkd->bqd", p, v)


if __name__ == "__main__":
    # Small shapes consistent with the module: batch=2, seq=8, emb=32.
    B, S, E = 2, 8, 32
    kdim, vdim = E, E   # module defaults: kdim = vdim = emb_size

    key = jax.random.PRNGKey(0)
    kx, kwq, kbq, kwk, kbk, kwv, kbv = jax.random.split(key, 7)

    # Deterministic params, mimicking nn.Linear's U(-1/sqrt(in), 1/sqrt(in)).
    bound = 1.0 / (E ** 0.5)
    x  = jax.random.normal(kx, (B, S, E), dtype=jnp.float32)
    wq = jax.random.uniform(kwq, (E, kdim), minval=-bound, maxval=bound, dtype=jnp.float32)
    bq = jax.random.uniform(kbq, (1, kdim), minval=-bound, maxval=bound, dtype=jnp.float32)
    wk = jax.random.uniform(kwk, (E, kdim), minval=-bound, maxval=bound, dtype=jnp.float32)
    bk = jax.random.uniform(kbk, (1, kdim), minval=-bound, maxval=bound, dtype=jnp.float32)
    wv = jax.random.uniform(kwv, (E, vdim), minval=-bound, maxval=bound, dtype=jnp.float32)
    bv = jax.random.uniform(kbv, (1, vdim), minval=-bound, maxval=bound, dtype=jnp.float32)

    ref = reference_forward(x, wq, bq, wk, bk, wv, bv, kdim)

    # f32 MXU inputs (exact path); approx-reciprocal softmax -> relaxed tol.
    out = attention_forward(x, wq, bq, wk, bk, wv, bv, use_bf16_matmul=False)
    out = jax.block_until_ready(out)
    assert out.shape == (B, S, vdim), out.shape
    err = float(jnp.max(jnp.abs(out - ref)))
    assert jnp.allclose(out, ref, atol=5e-3, rtol=5e-3), err

    # bf16 MXU inputs (v6e/v7x fast path); f32 accumulation, looser tolerance.
    out_bf16 = attention_forward(x, wq, bq, wk, bk, wv, bv, use_bf16_matmul=True)
    out_bf16 = jax.block_until_ready(out_bf16)
    err_bf16 = float(jnp.max(jnp.abs(out_bf16 - ref)))
    assert jnp.allclose(out_bf16, ref, atol=3e-2, rtol=3e-2), err_bf16

    print("KERNEL_OK")
</pallas_src>

<mosaic_0001>
module attributes {stable_mosaic.version = 11 : i64} {
  func.func @_attention_kernel(%arg0: i32, %arg1: memref<16x32xf32, #tpu.memory_space<vmem>>, %arg2: memref<32x128xf32, #tpu.memory_space<vmem>>, %arg3: memref<1x128xf32, #tpu.memory_space<vmem>>, %arg4: memref<32x128xf32, #tpu.memory_space<vmem>>, %arg5: memref<1x128xf32, #tpu.memory_space<vmem>>, %arg6: memref<32x128xf32, #tpu.memory_space<vmem>>, %arg7: memref<1x128xf32, #tpu.memory_space<vmem>>, %arg8: memref<16x128xf32, #tpu.memory_space<vmem>>) attributes {dimension_semantics = [#tpu.dimension_semantics<arbitrary>], iteration_bounds = array<i64: 1>, scalar_prefetch = 0 : i64, scratch_operands = 0 : i64, tpu.core_type = #tpu.core_type<tc>, window_params = [{pipeline_mode = #tpu.pipeline_mode<synchronous>, transform_indices = @transform_0, window_bounds = array<i64: 16, 32>}, {pipeline_mode = #tpu.pipeline_mode<synchronous>, transform_indices = @transform_1, window_bounds = array<i64: 32, 128>}, {pipeline_mode = #tpu.pipeline_mode<synchronous>, transform_indices = @transform_2, window_bounds = array<i64: 1, 128>}, {pipeline_mode = #tpu.pipeline_mode<synchronous>, transform_indices = @transform_3, window_bounds = array<i64: 32, 128>}, {pipeline_mode = #tpu.pipeline_mode<synchronous>, transform_indices = @transform_4, window_bounds = array<i64: 1, 128>}, {pipeline_mode = #tpu.pipeline_mode<synchronous>, transform_indices = @transform_5, window_bounds = array<i64: 32, 128>}, {pipeline_mode = #tpu.pipeline_mode<synchronous>, transform_indices = @transform_6, window_bounds = array<i64: 1, 128>}, {pipeline_mode = #tpu.pipeline_mode<synchronous>, transform_indices = @transform_7, window_bounds = array<i64: 16, 128>}]} {
    %c0 = arith.constant 0 : index
    %c0_0 = arith.constant 0 : index
    %0 = vector.load %arg1[%c0, %c0_0] : memref<16x32xf32, #tpu.memory_space<vmem>>, vector<16x32xf32>
    %c0_1 = arith.constant 0 : index
    %c0_2 = arith.constant 0 : index
    %1 = vector.load %arg3[%c0_1, %c0_2] : memref<1x128xf32, #tpu.memory_space<vmem>>, vector<1x128xf32>
    %c0_3 = arith.constant 0 : index
    %c0_4 = arith.constant 0 : index
    %2 = vector.load %arg5[%c0_3, %c0_4] : memref<1x128xf32, #tpu.memory_space<vmem>>, vector<1x128xf32>
    %c0_5 = arith.constant 0 : index
    %c0_6 = arith.constant 0 : index
    %3 = vector.load %arg7[%c0_5, %c0_6] : memref<1x128xf32, #tpu.memory_space<vmem>>, vector<1x128xf32>
    %c0_7 = arith.constant 0 : index
    %c0_8 = arith.constant 0 : index
    %4 = vector.load %arg2[%c0_7, %c0_8] : memref<32x128xf32, #tpu.memory_space<vmem>>, vector<32x128xf32>
    %cst = arith.constant dense<0.000000e+00> : vector<16x128xf32>
    %5 = tpu.matmul %0, %4, %cst {dimension_numbers = #tpu.dot_dimension_numbers<[1], [0], [0], [1], [0, 0, 1, 1], [], []>} : vector<16x32xf32>, vector<32x128xf32>, vector<16x128xf32> -> vector<16x128xf32>
    %6 = vector.broadcast %1 : vector<1x128xf32> to vector<16x128xf32>
    %7 = arith.addf %5, %6 : vector<16x128xf32>
    %c0_9 = arith.constant 0 : index
    %c0_10 = arith.constant 0 : index
    %8 = vector.load %arg4[%c0_9, %c0_10] : memref<32x128xf32, #tpu.memory_space<vmem>>, vector<32x128xf32>
    %cst_11 = arith.constant dense<0.000000e+00> : vector<16x128xf32>
    %9 = tpu.matmul %0, %8, %cst_11 {dimension_numbers = #tpu.dot_dimension_numbers<[1], [0], [0], [1], [0, 0, 1, 1], [], []>} : vector<16x32xf32>, vector<32x128xf32>, vector<16x128xf32> -> vector<16x128xf32>
    %10 = vector.broadcast %2 : vector<1x128xf32> to vector<16x128xf32>
    %11 = arith.addf %9, %10 : vector<16x128xf32>
    %c0_12 = arith.constant 0 : index
    %c0_13 = arith.constant 0 : index
    %12 = vector.load %arg6[%c0_12, %c0_13] : memref<32x128xf32, #tpu.memory_space<vmem>>, vector<32x128xf32>
    %cst_14 = arith.constant dense<0.000000e+00> : vector<16x128xf32>
    %13 = tpu.matmul %0, %12, %cst_14 {dimension_numbers = #tpu.dot_dimension_numbers<[1], [0], [0], [1], [0, 0, 1, 1], [], []>} : vector<16x32xf32>, vector<32x128xf32>, vector<16x128xf32> -> vector<16x128xf32>
    %14 = vector.broadcast %3 : vector<1x128xf32> to vector<16x128xf32>
    %15 = arith.addf %13, %14 : vector<16x128xf32>
    %cst_15 = arith.constant 0.176776692 : f32
    %16 = vector.broadcast %cst_15 : f32 to vector<16x128xf32>
    %17 = arith.mulf %7, %16 : vector<16x128xf32>
    %18 = vector.shape_cast %17 : vector<16x128xf32> to vector<2x8x128xf32>
    %19 = vector.shape_cast %11 : vector<16x128xf32> to vector<2x8x128xf32>
    %20 = vector.shape_cast %15 : vector<16x128xf32> to vector<2x8x128xf32>
    %cst_16 = arith.constant dense<0.000000e+00> : vector<2x8x8xf32>
    %21 = tpu.matmul %18, %19, %cst_16 {dimension_numbers = #tpu.dot_dimension_numbers<[2], [2], [1], [1], [0, 0, 0, 1, 1, 1], [0], [0]>} : vector<2x8x128xf32>, vector<2x8x128xf32>, vector<2x8x8xf32> -> vector<2x8x8xf32>
    %cst_17 = arith.constant dense<0xFF800000> : vector<2x8xf32>
    %22 = vector.multi_reduction <maximumf>, %21, %cst_17 [2] : vector<2x8x8xf32> to vector<2x8xf32>
    %23 = vector.shape_cast %22 : vector<2x8xf32> to vector<2x8x1xf32>
    %24 = vector.broadcast %23 : vector<2x8x1xf32> to vector<2x8x8xf32>
    %25 = arith.subf %21, %24 : vector<2x8x8xf32>
    %26 = math.exp %25 : vector<2x8x8xf32>
    %cst_18 = arith.constant dense<0.000000e+00> : vector<2x8xf32>
    %27 = vector.multi_reduction <add>, %26, %cst_18 [2] : vector<2x8x8xf32> to vector<2x8xf32>
    %28 = vector.shape_cast %27 : vector<2x8xf32> to vector<2x8x1xf32>
    %29 = tpu.reciprocal %28 {approx = true} : vector<2x8x1xf32> -> vector<2x8x1xf32>
    %30 = vector.broadcast %29 : vector<2x8x1xf32> to vector<2x8x8xf32>
    %31 = arith.mulf %26, %30 : vector<2x8x8xf32>
    %cst_19 = arith.constant dense<0.000000e+00> : vector<2x8x128xf32>
    %32 = tpu.matmul %31, %20, %cst_19 {dimension_numbers = #tpu.dot_dimension_numbers<[2], [1], [1], [2], [0, 0, 0, 1, 1, 2], [0], [0]>} : vector<2x8x8xf32>, vector<2x8x128xf32>, vector<2x8x128xf32> -> vector<2x8x128xf32>
    %33 = vector.shape_cast %32 : vector<2x8x128xf32> to vector<16x128xf32>
    %c0_20 = arith.constant 0 : index
    %c0_21 = arith.constant 0 : index
    %34 = vector.load %arg8[%c0_20, %c0_21] : memref<16x128xf32, #tpu.memory_space<vmem>>, vector<16x128xf32>
    tpu.vector_store %arg8[%c0_20, %c0_21], %33 {strides = array<i32>} : memref<16x128xf32, #tpu.memory_space<vmem>>, vector<16x128xf32>,
    return
  }
  func.func @transform_0(%arg0: i32) -> (i32, i32) {
    %c0_i32 = arith.constant 0 : i32
    %c0_i32_0 = arith.constant 0 : i32
    %c0_i32_1 = arith.constant 0 : i32
    return %c0_i32, %c0_i32_0 : i32, i32
  }
  func.func @transform_1(%arg0: i32) -> (i32, i32) {
    %c0_i32 = arith.constant 0 : i32
    %c0_i32_0 = arith.constant 0 : i32
    %c0_i32_1 = arith.constant 0 : i32
    return %c0_i32, %c0_i32_0 : i32, i32
  }
  func.func @transform_2(%arg0: i32) -> (i32, i32) {
    %c0_i32 = arith.constant 0 : i32
    %c0_i32_0 = arith.constant 0 : i32
    %c0_i32_1 = arith.constant 0 : i32
    return %c0_i32, %c0_i32_0 : i32, i32
  }
  func.func @transform_3(%arg0: i32) -> (i32, i32) {
    %c0_i32 = arith.constant 0 : i32
    %c0_i32_0 = arith.constant 0 : i32
    %c0_i32_1 = arith.constant 0 : i32
    return %c0_i32, %c0_i32_0 : i32, i32
  }
  func.func @transform_4(%arg0: i32) -> (i32, i32) {
    %c0_i32 = arith.constant 0 : i32
    %c0_i32_0 = arith.constant 0 : i32
    %c0_i32_1 = arith.constant 0 : i32
    return %c0_i32, %c0_i32_0 : i32, i32
  }
  func.func @transform_5(%arg0: i32) -> (i32, i32) {
    %c0_i32 = arith.constant 0 : i32
    %c0_i32_0 = arith.constant 0 : i32
    %c0_i32_1 = arith.constant 0 : i32
    return %c0_i32, %c0_i32_0 : i32, i32
  }
  func.func @transform_6(%arg0: i32) -> (i32, i32) {
    %c0_i32 = arith.constant 0 : i32
    %c0_i32_0 = arith.constant 0 : i32
    %c0_i32_1 = arith.constant 0 : i32
    return %c0_i32, %c0_i32_0 : i32, i32
  }
  func.func @transform_7(%arg0: i32) -> (i32, i32) {
    %c0_i32 = arith.constant 0 : i32
    %c0_i32_0 = arith.constant 0 : i32
    %c0_i32_1 = arith.constant 0 : i32
    return %c0_i32, %c0_i32_0 : i32, i32
  }
}

</mosaic_0001>

<llo_original>
// kernel: tpu_custom_call.1
$region0: #{tpu_custom_call.1}
  #allocation0 [shape = 'u32[]', space=smem, size = 0x4, offset = 0x4, fixed_abs, tag = 'smem constant byte address 0x4 - core index']
  #allocation1 [shape = 'u32[144,128]{1,0:T(1,128)}', space=vmem, size = 0x12000, scoped, tag = 'internal scratch']
  %s0 = inlined_call_operand.hbm [shape: f32[16,32], index: 0, kind: input, shape index: {}]
  %s1 = inlined_call_operand.hbm [shape: f32[32,128], index: 1, kind: input, shape index: {}]
  %s2 = inlined_call_operand.vmem [shape: f32[1,128], index: 2, kind: input, shape index: {}]
  %s3 = inlined_call_operand.hbm [shape: f32[32,128], index: 3, kind: input, shape index: {}]
  %s4 = inlined_call_operand.vmem [shape: f32[1,128], index: 4, kind: input, shape index: {}]
  %s5 = inlined_call_operand.hbm [shape: f32[32,128], index: 5, kind: input, shape index: {}]
  %s6 = inlined_call_operand.vmem [shape: f32[1,128], index: 6, kind: input, shape index: {}]
  %s7 = inlined_call_operand.hbm [shape: f32[16,128], index: 7, kind: output, shape index: {}]
  %s8 = sld [smem:[#allocation0]]
  $region54: #{tpu_custom_call.1} parent=0
    _
  %s10 = ssub.s32 1, %s8
  %s11 = scalar_select 0, %s10, %s8
  $region1: #{tpu_custom_call.1} parent=0
    #allocation2 [shape = 'u8[8192]{0}', space=vmem, size = 0x2000, scoped, tag = 'input window, operand 0, single buffered']
    #allocation3 [shape = 's32[1]{0}', space=sflag, size = 0x4, scoped, tag = 'scoped memory for tpu_custom_call.1']
    #allocation4 [shape = 's32[1]{0}', space=sflag, size = 0x4, scoped, tag = 'scoped memory for tpu_custom_call.1']
    #allocation5 [shape = 'u8[16384]{0}', space=vmem, size = 0x4000, scoped, tag = 'input window, operand 1, single buffered']
    #allocation6 [shape = 's32[1]{0}', space=sflag, size = 0x4, scoped, tag = 'scoped memory for tpu_custom_call.1']
    #allocation7 [shape = 'u8[16384]{0}', space=vmem, size = 0x4000, scoped, tag = 'input window, operand 3, single buffered']
    #allocation8 [shape = 'u8[16384]{0}', space=vmem, size = 0x4000, scoped, tag = 'input window, operand 5, single buffered']
    #allocation9 [shape = 's32[1]{0}', space=sflag, size = 0x4, scoped, tag = 'scoped memory for tpu_custom_call.1']
    #allocation10 [shape = 'u8[8192]{0}', space=vmem, size = 0x2000, scoped, tag = 'output window, operand 0, single buffered']
    %12 = vsyncpa [#allocation3], 0
    %13 = vsyncpa [#allocation6], 0
    %14 = vsyncpa [#allocation9], 0
    %15 = vsyncpa [#allocation4], 0
    // Predicated region
    $region2: #{tpu_custom_call.1} parent=1 // pred_check
      _
    $region3: #{tpu_custom_call.1} parent=1 // pred_check_branch
      %17 = sbr.rel (0) target = $region5
    $region4: #{tpu_custom_call.1} parent=1 // pred_region
      %s19 = ssub.s32 256, 256
      %20 = vsyncadd [#allocation3], %s19
      %s21 = sshll.u32 [#allocation2], 4
      %s22 = int_to_ptr.vmem [resolvable:$true] %s21
      %27 = dma.hbm_to_vmem [thread:$0]  %s0, 256, %s22, [#allocation3], 128, 128, 8
    $region5: #{tpu_custom_call.1} parent=1 // pred_fallthru
      _
    // Predicated region
    $region6: #{tpu_custom_call.1} parent=1 // pred_check
      _
    $region7: #{tpu_custom_call.1} parent=1 // pred_check_branch
      %29 = sbr.rel (0) target = $region9
    $region8: #{tpu_custom_call.1} parent=1 // pred_region
      %s31 = ssub.s32 512, 512
      %32 = vsyncadd [#allocation6], %s31
      %s33 = sshll.u32 [#allocation5], 4
      %s34 = int_to_ptr.vmem [resolvable:$true] %s33
      %39 = dma.hbm_to_vmem [thread:$0]  %s1, 512, %s34, [#allocation6], 128, 128, 8
    $region9: #{tpu_custom_call.1} parent=1 // pred_fallthru
      _
    // Predicated region
    $region10: #{tpu_custom_call.1} parent=1 // pred_check
      _
    $region11: #{tpu_custom_call.1} parent=1 // pred_check_branch
      %41 = sbr.rel (0) target = $region13
    $region12: #{tpu_custom_call.1} parent=1 // pred_region
      _
    $region13: #{tpu_custom_call.1} parent=1 // pred_fallthru
      _
    // Predicated region
    $region14: #{tpu_custom_call.1} parent=1 // pred_check
      _
    $region15: #{tpu_custom_call.1} parent=1 // pred_check_branch
      %43 = sbr.rel (0) target = $region17
    $region16: #{tpu_custom_call.1} parent=1 // pred_region
      %s45 = ssub.s32 512, 512
      %46 = vsyncadd [#allocation6], %s45
      %s47 = sshll.u32 [#allocation7], 4
      %s48 = int_to_ptr.vmem [resolvable:$true] %s47
      %53 = dma.hbm_to_vmem [thread:$0]  %s3, 512, %s48, [#allocation6], 128, 128, 8
    $region17: #{tpu_custom_call.1} parent=1 // pred_fallthru
      _
    // Predicated region
    $region18: #{tpu_custom_call.1} parent=1 // pred_check
      _
    $region19: #{tpu_custom_call.1} parent=1 // pred_check_branch
      %55 = sbr.rel (0) target = $region21
    $region20: #{tpu_custom_call.1} parent=1 // pred_region
      _
    $region21: #{tpu_custom_call.1} parent=1 // pred_fallthru
      _
    // Predicated region
    $region22: #{tpu_custom_call.1} parent=1 // pred_check
      _
    $region23: #{tpu_custom_call.1} parent=1 // pred_check_branch
      %57 = sbr.rel (0) target = $region25
    $region24: #{tpu_custom_call.1} parent=1 // pred_region
      %s59 = ssub.s32 512, 512
      %60 = vsyncadd [#allocation9], %s59
      %s61 = sshll.u32 [#allocation8], 4
      %s62 = int_to_ptr.vmem [resolvable:$true] %s61
      %67 = dma.hbm_to_vmem [thread:$0]  %s5, 512, %s62, [#allocation9], 128, 128, 8
    $region25: #{tpu_custom_call.1} parent=1 // pred_fallthru
      _
    // Predicated region
    $region26: #{tpu_custom_call.1} parent=1 // pred_check
      _
    $region27: #{tpu_custom_call.1} parent=1 // pred_check_branch
      %69 = sbr.rel (0) target = $region29
    $region28: #{tpu_custom_call.1} parent=1 // pred_region
      _
    $region29: #{tpu_custom_call.1} parent=1 // pred_fallthru
      _
    // Predicated region
    $region30: #{tpu_custom_call.1} parent=1 // pred_check
      _
    $region31: #{tpu_custom_call.1} parent=1 // pred_check_branch
      %71 = sbr.rel (0) target = $region33
    $region32: #{tpu_custom_call.1} parent=1 // pred_region
      %72 = dma.done [#allocation3], 256
    $region33: #{tpu_custom_call.1} parent=1 // pred_fallthru
      _
    // Predicated region
    $region34: #{tpu_custom_call.1} parent=1 // pred_check
      _
    $region35: #{tpu_custom_call.1} parent=1 // pred_check_branch
      %74 = sbr.rel (0) target = $region37
    $region36: #{tpu_custom_call.1} parent=1 // pred_region
      %75 = dma.done [#allocation6], 512
    $region37: #{tpu_custom_call.1} parent=1 // pred_fallthru
      _
    // Predicated region
    $region38: #{tpu_custom_call.1} parent=1 // pred_check
      _
    $region39: #{tpu_custom_call.1} parent=1 // pred_check_branch
      %77 = sbr.rel (0) target = $region41
    $region40: #{tpu_custom_call.1} parent=1 // pred_region
      %78 = dma.done [#allocation6], 512
    $region41: #{tpu_custom_call.1} parent=1 // pred_fallthru
      _
    // Predicated region
    $region42: #{tpu_custom_call.1} parent=1 // pred_check
      _
    $region43: #{tpu_custom_call.1} parent=1 // pred_check_branch
      %80 = sbr.rel (0) target = $region45
    $region44: #{tpu_custom_call.1} parent=1 // pred_region
      %81 = dma.done [#allocation9], 512
    $region45: #{tpu_custom_call.1} parent=1 // pred_fallthru
      _
    %v82 = vld [vmem:[#allocation2] sm:$0xff]
    %v83 = vld [vmem:[#allocation2 + $0x8] sm:$0xff]
    %v84 = vld [vmem:[%s2] sm:$0x1]
    %v85 = vld [vmem:[%s4] sm:$0x1]
    %v86 = vld [vmem:[%s6] sm:$0x1]
    %v87 = vld [vmem:[#allocation5] sm:$0xff]
    %v88 = vld [vmem:[#allocation5 + $0x8] sm:$0xff]
    %v89 = vld [vmem:[#allocation5 + $0x10] sm:$0xff]
    %v90 = vld [vmem:[#allocation5 + $0x18] sm:$0xff]
    %v92 = vlaneseq
    %v93 = vshrl.u32 %v92, 7
    %v94 = vsub.s32 0, %v93
    %v95 = vrot.slane %v84, %v94
    %vm97 = vcmask 261120
    %v99 = vsel %vm97, %v82, 0
    %v102 = vsel %vm97, %v83, 0
    %104 = vmatprep.subr.mxu0 0.0
    %105 = vmatpush1.msra.mxu0 %v87
    %106 = vmatprep.subr.mxu0 0.0
    %107 = vmatpush1.msra.mxu0 %v88
    %108 = vmatprep.subr.mxu0 0.0
    %109 = vmatpush1.msra.mxu0 %v89
    %110 = vmatprep.subr.mxu0 0.0
    %111 = vmatpush1.msra.mxu0 %v90
    %112 = vmatprep.subr.mxu0 0.0
    %113 = vmatpush1.msra.mxu0 0.0
    %114 = vmatprep.subr.mxu0 0.0
    %115 = vmatpush1.msra.mxu0 0.0
    %116 = vmatprep.subr.mxu0 0.0
    %117 = vmatpush1.msra.mxu0 0.0
    %118 = vmatprep.subr.mxu0 0.0
    %119 = vmatpush1.msra.mxu0 0.0
    %120 = vmatprep.subr.mxu0 0.0
    %121 = vmatpush1.msra.mxu0 0.0
    %122 = vmatprep.subr.mxu0 0.0
    %123 = vmatpush1.msra.mxu0 0.0
    %124 = vmatprep.subr.mxu0 0.0
    %125 = vmatpush1.msra.mxu0 0.0
    %126 = vmatprep.subr.mxu0 0.0
    %127 = vmatpush1.msra.mxu0 0.0
    %128 = vmatprep.subr.mxu0 0.0
    %129 = vmatpush1.msra.mxu0 0.0
    %130 = vmatprep.subr.mxu0 0.0
    %131 = vmatpush1.msra.mxu0 0.0
    %132 = vmatprep.subr.mxu0 0.0
    %133 = vmatpush1.msra.mxu0 0.0
    %134 = vmatprep.subr.mxu0 0.0
    %135 = vmatpush1.msra.mxu0 0.0
    %136 = vmatprep.subr.mxu0 0.0
    %137 = vmatpush1.msra.mxu0 0.0
    %138 = vmatprep.subr.mxu0 0.0
    %139 = vmatpush1.msra.mxu0 0.0
    %140 = vmatprep.subr.mxu0 0.0
    %141 = vmatpush1.msra.mxu0 0.0
    %142 = vmatprep.subr.mxu0 0.0
    %143 = vmatpush1.msra.mxu0 0.0
    %144 = vmatprep.subr.mxu0 0.0
    %145 = vmatpush1.msra.mxu0 0.0
    %146 = vmatprep.subr.mxu0 0.0
    %147 = vmatpush1.msra.mxu0 0.0
    %148 = vmatprep.subr.mxu0 0.0
    %149 = vmatpush1.msra.mxu0 0.0
    %150 = vmatprep.subr.mxu0 0.0
    %151 = vmatpush1.msra.mxu0 0.0
    %152 = vmatprep.subr.mxu0 0.0
    %153 = vmatpush1.msra.mxu0 0.0
    %154 = vmatprep.subr.mxu0 0.0
    %155 = vmatpush1.msra.mxu0 0.0
    %156 = vmatprep.subr.mxu0 0.0
    %157 = vmatpush1.msra.mxu0 0.0
    %158 = vmatprep.subr.mxu0 0.0
    %159 = vmatpush1.msra.mxu0 0.0
    %160 = vmatprep.subr.mxu0 0.0
    %161 = vmatpush1.msra.mxu0 0.0
    %162 = vmatprep.subr.mxu0 0.0
    %163 = vmatpush1.msra.mxu0 0.0
    %164 = vmatprep.subr.mxu0 0.0
    %165 = vmatpush1.msra.mxu0 0.0
    %166 = vmatprep.subr.mxu0 0.0
    %167 = vmatpush1.msra.mxu0 0.0
    %168 = vmatprep.mubr.f32.mxu0 0.0
    %169 = vmatmul.mubr.f32.gmra.mrb[0].mxu0 %v99
    %v170 = vpop.f32.mrb[0].mxu0
    %v171 = vadd.f32 %v95, %v170
    %v172 = vpop.f32.mrb[0].mxu0
    %173 = vmatprep.mubr.f32.mxu0 0.0
    %174 = vmatmul.mubr.f32.gmra.mrb[0].mxu0 %v102
    %v175 = vpop.f32.mrb[0].mxu0
    %v176 = vadd.f32 %v95, %v175
    %v177 = vpop.f32.mrb[0].mxu0
    %178 = vdwg.mxu0
    %v179 = vld [vmem:[#allocation7] sm:$0xff]
    %v180 = vld [vmem:[#allocation7 + $0x8] sm:$0xff]
    %v181 = vld [vmem:[#allocation7 + $0x10] sm:$0xff]
    %v182 = vld [vmem:[#allocation7 + $0x18] sm:$0xff]
    %v184 = vlaneseq
    %v185 = vshrl.u32 %v184, 7
    %v186 = vsub.s32 0, %v185
    %v187 = vrot.slane %v85, %v186
    %189 = vmatprep.subr.mxu0 0.0
    %190 = vmatpush1.msra.mxu0 %v179
    %191 = vmatprep.subr.mxu0 0.0
    %192 = vmatpush1.msra.mxu0 %v180
    %193 = vmatprep.subr.mxu0 0.0
    %194 = vmatpush1.msra.mxu0 %v181
    %195 = vmatprep.subr.mxu0 0.0
    %196 = vmatpush1.msra.mxu0 %v182
    %197 = vmatprep.subr.mxu0 0.0
    %198 = vmatpush1.msra.mxu0 0.0
    %199 = vmatprep.subr.mxu0 0.0
    %200 = vmatpush1.msra.mxu0 0.0
    %201 = vmatprep.subr.mxu0 0.0
    %202 = vmatpush1.msra.mxu0 0.0
    %203 = vmatprep.subr.mxu0 0.0
    %204 = vmatpush1.msra.mxu0 0.0
    %205 = vmatprep.subr.mxu0 0.0
    %206 = vmatpush1.msra.mxu0 0.0
    %207 = vmatprep.subr.mxu0 0.0
    %208 = vmatpush1.msra.mxu0 0.0
    %209 = vmatprep.subr.mxu0 0.0
    %210 = vmatpush1.msra.mxu0 0.0
    %211 = vmatprep.subr.mxu0 0.0
    %212 = vmatpush1.msra.mxu0 0.0
    %213 = vmatprep.subr.mxu0 0.0
    %214 = vmatpush1.msra.mxu0 0.0
    %215 = vmatprep.subr.mxu0 0.0
    %216 = vmatpush1.msra.mxu0 0.0
    %217 = vmatprep.subr.mxu0 0.0
    %218 = vmatpush1.msra.mxu0 0.0
    %219 = vmatprep.subr.mxu0 0.0
    %220 = vmatpush1.msra.mxu0 0.0
    %221 = vmatprep.subr.mxu0 0.0
    %222 = vmatpush1.msra.mxu0 0.0
    %223 = vmatprep.subr.mxu0 0.0
    %224 = vmatpush1.msra.mxu0 0.0
    %225 = vmatprep.subr.mxu0 0.0
    %226 = vmatpush1.msra.mxu0 0.0
    %227 = vmatprep.subr.mxu0 0.0
    %228 = vmatpush1.msra.mxu0 0.0
    %229 = vmatprep.subr.mxu0 0.0
    %230 = vmatpush1.msra.mxu0 0.0
    %231 = vmatprep.subr.mxu0 0.0
    %232 = vmatpush1.msra.mxu0 0.0
    %233 = vmatprep.subr.mxu0 0.0
    %234 = vmatpush1.msra.mxu0 0.0
    %235 = vmatprep.subr.mxu0 0.0
    %236 = vmatpush1.msra.mxu0 0.0
    %237 = vmatprep.subr.mxu0 0.0
    %238 = vmatpush1.msra.mxu0 0.0
    %239 = vmatprep.subr.mxu0 0.0
    %240 = vmatpush1.msra.mxu0 0.0
    %241 = vmatprep.subr.mxu0 0.0
    %242 = vmatpush1.msra.mxu0 0.0
    %243 = vmatprep.subr.mxu0 0.0
    %244 = vmatpush1.msra.mxu0 0.0
    %245 = vmatprep.subr.mxu0 0.0
    %246 = vmatpush1.msra.mxu0 0.0
    %247 = vmatprep.subr.mxu0 0.0
    %248 = vmatpush1.msra.mxu0 0.0
    %249 = vmatprep.subr.mxu0 0.0
    %250 = vmatpush1.msra.mxu0 0.0
    %251 = vmatprep.subr.mxu0 0.0
    %252 = vmatpush1.msra.mxu0 0.0
    %253 = vmatprep.mubr.f32.mxu0 0.0
    %254 = vmatmul.mubr.f32.gmra.mrb[0].mxu0 %v99
    %v255 = vpop.f32.mrb[0].mxu0
    %v256 = vadd.f32 %v187, %v255
    %v257 = vpop.f32.mrb[0].mxu0
    %258 = vmatprep.mubr.f32.mxu0 0.0
    %259 = vmatmul.mubr.f32.gmra.mrb[0].mxu0 %v102
    %v260 = vpop.f32.mrb[0].mxu0
    %v261 = vadd.f32 %v187, %v260
    %v262 = vpop.f32.mrb[0].mxu0
    %263 = vdwg.mxu0
    %v264 = vld [vmem:[#allocation8] sm:$0xff]
    %v265 = vld [vmem:[#allocation8 + $0x8] sm:$0xff]
    %v266 = vld [vmem:[#allocation8 + $0x10] sm:$0xff]
    %v267 = vld [vmem:[#allocation8 + $0x18] sm:$0xff]
    %v269 = vlaneseq
    %v270 = vshrl.u32 %v269, 7
    %v271 = vsub.s32 0, %v270
    %v272 = vrot.slane %v86, %v271
    %274 = vmatprep.subr.mxu0 0.0
    %275 = vmatpush1.msra.mxu0 %v264
    %276 = vmatprep.subr.mxu0 0.0
    %277 = vmatpush1.msra.mxu0 %v265
    %278 = vmatprep.subr.mxu0 0.0
    %279 = vmatpush1.msra.mxu0 %v266
    %280 = vmatprep.subr.mxu0 0.0
    %281 = vmatpush1.msra.mxu0 %v267
    %282 = vmatprep.subr.mxu0 0.0
    %283 = vmatpush1.msra.mxu0 0.0
    %284 = vmatprep.subr.mxu0 0.0
    %285 = vmatpush1.msra.mxu0 0.0
    %286 = vmatprep.subr.mxu0 0.0
    %287 = vmatpush1.msra.mxu0 0.0
    %288 = vmatprep.subr.mxu0 0.0
    %289 = vmatpush1.msra.mxu0 0.0
    %290 = vmatprep.subr.mxu0 0.0
    %291 = vmatpush1.msra.mxu0 0.0
    %292 = vmatprep.subr.mxu0 0.0
    %293 = vmatpush1.msra.mxu0 0.0
    %294 = vmatprep.subr.mxu0 0.0
    %295 = vmatpush1.msra.mxu0 0.0
    %296 = vmatprep.subr.mxu0 0.0
    %297 = vmatpush1.msra.mxu0 0.0
    %298 = vmatprep.subr.mxu0 0.0
    %299 = vmatpush1.msra.mxu0 0.0
    %300 = vmatprep.subr.mxu0 0.0
    %301 = vmatpush1.msra.mxu0 0.0
    %302 = vmatprep.subr.mxu0 0.0
    %303 = vmatpush1.msra.mxu0 0.0
    %304 = vmatprep.subr.mxu0 0.0
    %305 = vmatpush1.msra.mxu0 0.0
    %306 = vmatprep.subr.mxu0 0.0
    %307 = vmatpush1.msra.mxu0 0.0
    %308 = vmatprep.subr.mxu0 0.0
    %309 = vmatpush1.msra.mxu0 0.0
    %310 = vmatprep.subr.mxu0 0.0
    %311 = vmatpush1.msra.mxu0 0.0
    %312 = vmatprep.subr.mxu0 0.0
    %313 = vmatpush1.msra.mxu0 0.0
    %314 = vmatprep.subr.mxu0 0.0
    %315 = vmatpush1.msra.mxu0 0.0
    %316 = vmatprep.subr.mxu0 0.0
    %317 = vmatpush1.msra.mxu0 0.0
    %318 = vmatprep.subr.mxu0 0.0
    %319 = vmatpush1.msra.mxu0 0.0
    %320 = vmatprep.subr.mxu0 0.0
    %321 = vmatpush1.msra.mxu0 0.0
    %322 = vmatprep.subr.mxu0 0.0
    %323 = vmatpush1.msra.mxu0 0.0
    %324 = vmatprep.subr.mxu0 0.0
    %325 = vmatpush1.msra.mxu0 0.0
    %326 = vmatprep.subr.mxu0 0.0
    %327 = vmatpush1.msra.mxu0 0.0
    %328 = vmatprep.subr.mxu0 0.0
    %329 = vmatpush1.msra.mxu0 0.0
    %330 = vmatprep.subr.mxu0 0.0
    %331 = vmatpush1.msra.mxu0 0.0
    %332 = vmatprep.subr.mxu0 0.0
    %333 = vmatpush1.msra.mxu0 0.0
    %334 = vmatprep.subr.mxu0 0.0
    %335 = vmatpush1.msra.mxu0 0.0
    %336 = vmatprep.subr.mxu0 0.0
    %337 = vmatpush1.msra.mxu0 0.0
    %338 = vmatprep.mubr.f32.mxu0 0.0
    %339 = vmatmul.mubr.f32.gmra.mrb[0].mxu0 %v99
    %v340 = vpop.f32.mrb[0].mxu0
    %v341 = vadd.f32 %v272, %v340
    %v342 = vpop.f32.mrb[0].mxu0
    %343 = vmatprep.mubr.f32.mxu0 0.0
    %344 = vmatmul.mubr.f32.gmra.mrb[0].mxu0 %v102
    %v345 = vpop.f32.mrb[0].mxu0
    %v346 = vadd.f32 %v272, %v345
    %v347 = vpop.f32.mrb[0].mxu0
    %348 = vdwg.mxu0
    %v349 = vmul.f32 %v171, 0.17677669
    %v350 = vmul.f32 %v176, 0.17677669
    %351 = vmatprep.subr.mxu0 0.0
    %352 = vmatpush1.xpose.msra.mxu0 %v256
    %353 = vmatprep.subr.mxu0 0.0
    %354 = vmatpush1.xpose.msra.mxu0 0.0
    %355 = vmatprep.subr.mxu0 0.0
    %356 = vmatpush1.xpose.msra.mxu0 0.0
    %357 = vmatprep.subr.mxu0 0.0
    %358 = vmatpush1.xpose.msra.mxu0 0.0
    %359 = vmatprep.subr.mxu0 0.0
    %360 = vmatpush1.xpose.msra.mxu0 0.0
    %361 = vmatprep.subr.mxu0 0.0
    %362 = vmatpush1.xpose.msra.mxu0 0.0
    %363 = vmatprep.subr.mxu0 0.0
    %364 = vmatpush1.xpose.msra.mxu0 0.0
    %365 = vmatprep.subr.mxu0 0.0
    %366 = vmatpush1.xpose.msra.mxu0 0.0
    %367 = vmatprep.subr.mxu0 0.0
    %368 = vmatpush1.xpose.msra.mxu0 0.0
    %369 = vmatprep.subr.mxu0 0.0
    %370 = vmatpush1.xpose.msra.mxu0 0.0
    %371 = vmatprep.subr.mxu0 0.0
    %372 = vmatpush1.xpose.msra.mxu0 0.0
    %373 = vmatprep.subr.mxu0 0.0
    %374 = vmatpush1.xpose.msra.mxu0 0.0
    %375 = vmatprep.subr.mxu0 0.0
    %376 = vmatpush1.xpose.msra.mxu0 0.0
    %377 = vmatprep.subr.mxu0 0.0
    %378 = vmatpush1.xpose.msra.mxu0 0.0
    %379 = vmatprep.subr.mxu0 0.0
    %380 = vmatpush1.xpose.msra.mxu0 0.0
    %381 = vmatprep.subr.mxu0 0.0
    %382 = vmatpush1.xpose.msra.mxu0 0.0
    %383 = vmatprep.subr.mxu0 0.0
    %384 = vmatpush1.xpose.msra.mxu0 0.0
    %385 = vmatprep.subr.mxu0 0.0
    %386 = vmatpush1.xpose.msra.mxu0 0.0
    %387 = vmatprep.subr.mxu0 0.0
    %388 = vmatpush1.xpose.msra.mxu0 0.0
    %389 = vmatprep.subr.mxu0 0.0
    %390 = vmatpush1.xpose.msra.mxu0 0.0
    %391 = vmatprep.subr.mxu0 0.0
    %392 = vmatpush1.xpose.msra.mxu0 0.0
    %393 = vmatprep.subr.mxu0 0.0
    %394 = vmatpush1.xpose.msra.mxu0 0.0
    %395 = vmatprep.subr.mxu0 0.0
    %396 = vmatpush1.xpose.msra.mxu0 0.0
    %397 = vmatprep.subr.mxu0 0.0
    %398 = vmatpush1.xpose.msra.mxu0 0.0
    %399 = vmatprep.subr.mxu0 0.0
    %400 = vmatpush1.xpose.msra.mxu0 0.0
    %401 = vmatprep.subr.mxu0 0.0
    %402 = vmatpush1.xpose.msra.mxu0 0.0
    %403 = vmatprep.subr.mxu0 0.0
    %404 = vmatpush1.xpose.msra.mxu0 0.0
    %405 = vmatprep.subr.mxu0 0.0
    %406 = vmatpush1.xpose.msra.mxu0 0.0
    %407 = vmatprep.subr.mxu0 0.0
    %408 = vmatpush1.xpose.msra.mxu0 0.0
    %409 = vmatprep.subr.mxu0 0.0
    %410 = vmatpush1.xpose.msra.mxu0 0.0
    %411 = vmatprep.subr.mxu0 0.0
    %412 = vmatpush1.xpose.msra.mxu0 0.0
    %413 = vmatprep.subr.mxu0 0.0
    %414 = vmatpush1.xpose.msra.mxu0 0.0
    %415 = vmatprep.mubr.f32.mxu0 0.0
    %416 = vmatmul.mubr.f32.gmra.mrb[0].mxu0 %v349
    %v417 = vpop.f32.mrb[0].mxu0
    %v418 = vadd.f32 0.0, %v417
    %v419 = vpop.f32.mrb[0].mxu0
    %420 = vdwg.mxu0
    %421 = vmatprep.subr.mxu0 0.0
    %422 = vmatpush1.xpose.msra.mxu0 %v261
    %423 = vmatprep.subr.mxu0 0.0
    %424 = vmatpush1.xpose.msra.mxu0 0.0
    %425 = vmatprep.subr.mxu0 0.0
    %426 = vmatpush1.xpose.msra.mxu0 0.0
    %427 = vmatprep.subr.mxu0 0.0
    %428 = vmatpush1.xpose.msra.mxu0 0.0
    %429 = vmatprep.subr.mxu0 0.0
    %430 = vmatpush1.xpose.msra.mxu0 0.0
    %431 = vmatprep.subr.mxu0 0.0
    %432 = vmatpush1.xpose.msra.mxu0 0.0
    %433 = vmatprep.subr.mxu0 0.0
    %434 = vmatpush1.xpose.msra.mxu0 0.0
    %435 = vmatprep.subr.mxu0 0.0
    %436 = vmatpush1.xpose.msra.mxu0 0.0
    %437 = vmatprep.subr.mxu0 0.0
    %438 = vmatpush1.xpose.msra.mxu0 0.0
    %439 = vmatprep.subr.mxu0 0.0
    %440 = vmatpush1.xpose.msra.mxu0 0.0
    %441 = vmatprep.subr.mxu0 0.0
    %442 = vmatpush1.xpose.msra.mxu0 0.0
    %443 = vmatprep.subr.mxu0 0.0
    %444 = vmatpush1.xpose.msra.mxu0 0.0
    %445 = vmatprep.subr.mxu0 0.0
    %446 = vmatpush1.xpose.msra.mxu0 0.0
    %447 = vmatprep.subr.mxu0 0.0
    %448 = vmatpush1.xpose.msra.mxu0 0.0
    %449 = vmatprep.subr.mxu0 0.0
    %450 = vmatpush1.xpose.msra.mxu0 0.0
    %451 = vmatprep.subr.mxu0 0.0
    %452 = vmatpush1.xpose.msra.mxu0 0.0
    %453 = vmatprep.subr.mxu0 0.0
    %454 = vmatpush1.xpose.msra.mxu0 0.0
    %455 = vmatprep.subr.mxu0 0.0
    %456 = vmatpush1.xpose.msra.mxu0 0.0
    %457 = vmatprep.subr.mxu0 0.0
    %458 = vmatpush1.xpose.msra.mxu0 0.0
    %459 = vmatprep.subr.mxu0 0.0
    %460 = vmatpush1.xpose.msra.mxu0 0.0
    %461 = vmatprep.subr.mxu0 0.0
    %462 = vmatpush1.xpose.msra.mxu0 0.0
    %463 = vmatprep.subr.mxu0 0.0
    %464 = vmatpush1.xpose.msra.mxu0 0.0
    %465 = vmatprep.subr.mxu0 0.0
    %466 = vmatpush1.xpose.msra.mxu0 0.0
    %467 = vmatprep.subr.mxu0 0.0
    %468 = vmatpush1.xpose.msra.mxu0 0.0
    %469 = vmatprep.subr.mxu0 0.0
    %470 = vmatpush1.xpose.msra.mxu0 0.0
    %471 = vmatprep.subr.mxu0 0.0
    %472 = vmatpush1.xpose.msra.mxu0 0.0
    %473 = vmatprep.subr.mxu0 0.0
    %474 = vmatpush1.xpose.msra.mxu0 0.0
    %475 = vmatprep.subr.mxu0 0.0
    %476 = vmatpush1.xpose.msra.mxu0 0.0
    %477 = vmatprep.subr.mxu0 0.0
    %478 = vmatpush1.xpose.msra.mxu0 0.0
    %479 = vmatprep.subr.mxu0 0.0
    %480 = vmatpush1.xpose.msra.mxu0 0.0
    %481 = vmatprep.subr.mxu0 0.0
    %482 = vmatpush1.xpose.msra.mxu0 0.0
    %483 = vmatprep.subr.mxu0 0.0
    %484 = vmatpush1.xpose.msra.mxu0 0.0
    %485 = vmatprep.mubr.f32.mxu0 0.0
    %486 = vmatmul.mubr.f32.gmra.mrb[0].mxu0 %v350
    %v487 = vpop.f32.mrb[0].mxu0
    %v488 = vadd.f32 0.0, %v487
    %v489 = vpop.f32.mrb[0].mxu0
    %490 = vdwg.mxu0
    %vm491 = vcmask 64512
    %v492 = vsel %vm491, %v418, -inf
    %493 = vmax.xlane.f32.xlu0 %v492
    %v494 = vpop.xlane.xlu0 %493
    %v495 = vsel %vm491, %v488, -inf
    %496 = vmax.xlane.f32.xlu0 %v495
    %v497 = vpop.xlane.xlu0 %496
    %v498 = vsub.f32 %v418, %v494
    %v499 = vsub.f32 %v488, %v497
    %v500 = vmul.f32 %v498, 1.442695
    %v501 = vpow.pop %v500
    %v502 = vmul.f32 %v499, 1.442695
    %v503 = vpow.pop %v502
    %v504 = vsel %vm491, %v501, 0.0
    %505 = vadd.xlane.f32.xlu0 %v504
    %v506 = vpop.xlane.xlu0 %505
    %v507 = vsel %vm491, %v503, 0.0
    %508 = vadd.xlane.f32.xlu0 %v507
    %v509 = vpop.xlane.xlu0 %508
    %v510 = vrcp.pop %v506
    %v511 = vrcp.pop %v509
    %v512 = vmul.f32 %v501, %v510
    %v513 = vmul.f32 %v503, %v511
    %v515 = vsel %vm491, %v512, 0
    %517 = vmatprep.subr.mxu0 0.0
    %518 = vmatpush1.msra.mxu0 %v341
    %519 = vmatprep.subr.mxu0 0.0
    %520 = vmatpush1.msra.mxu0 0.0
    %521 = vmatprep.subr.mxu0 0.0
    %522 = vmatpush1.msra.mxu0 0.0
    %523 = vmatprep.subr.mxu0 0.0
    %524 = vmatpush1.msra.mxu0 0.0
    %525 = vmatprep.subr.mxu0 0.0
    %526 = vmatpush1.msra.mxu0 0.0
    %527 = vmatprep.subr.mxu0 0.0
    %528 = vmatpush1.msra.mxu0 0.0
    %529 = vmatprep.subr.mxu0 0.0
    %530 = vmatpush1.msra.mxu0 0.0
    %531 = vmatprep.subr.mxu0 0.0
    %532 = vmatpush1.msra.mxu0 0.0
    %533 = vmatprep.subr.mxu0 0.0
    %534 = vmatpush1.msra.mxu0 0.0
    %535 = vmatprep.subr.mxu0 0.0
    %536 = vmatpush1.msra.mxu0 0.0
    %537 = vmatprep.subr.mxu0 0.0
    %538 = vmatpush1.msra.mxu0 0.0
    %539 = vmatprep.subr.mxu0 0.0
    %540 = vmatpush1.msra.mxu0 0.0
    %541 = vmatprep.subr.mxu0 0.0
    %542 = vmatpush1.msra.mxu0 0.0
    %543 = vmatprep.subr.mxu0 0.0
    %544 = vmatpush1.msra.mxu0 0.0
    %545 = vmatprep.subr.mxu0 0.0
    %546 = vmatpush1.msra.mxu0 0.0
    %547 = vmatprep.subr.mxu0 0.0
    %548 = vmatpush1.msra.mxu0 0.0
    %549 = vmatprep.subr.mxu0 0.0
    %550 = vmatpush1.msra.mxu0 0.0
    %551 = vmatprep.subr.mxu0 0.0
    %552 = vmatpush1.msra.mxu0 0.0
    %553 = vmatprep.subr.mxu0 0.0
    %554 = vmatpush1.msra.mxu0 0.0
    %555 = vmatprep.subr.mxu0 0.0
    %556 = vmatpush1.msra.mxu0 0.0
    %557 = vmatprep.subr.mxu0 0.0
    %558 = vmatpush1.msra.mxu0 0.0
    %559 = vmatprep.subr.mxu0 0.0
    %560 = vmatpush1.msra.mxu0 0.0
    %561 = vmatprep.subr.mxu0 0.0
    %562 = vmatpush1.msra.mxu0 0.0
    %563 = vmatprep.subr.mxu0 0.0
    %564 = vmatpush1.msra.mxu0 0.0
    %565 = vmatprep.subr.mxu0 0.0
    %566 = vmatpush1.msra.mxu0 0.0
    %567 = vmatprep.subr.mxu0 0.0
    %568 = vmatpush1.msra.mxu0 0.0
    %569 = vmatprep.subr.mxu0 0.0
    %570 = vmatpush1.msra.mxu0 0.0
    %571 = vmatprep.subr.mxu0 0.0
    %572 = vmatpush1.msra.mxu0 0.0
    %573 = vmatprep.subr.mxu0 0.0
    %574 = vmatpush1.msra.mxu0 0.0
    %575 = vmatprep.subr.mxu0 0.0
    %576 = vmatpush1.msra.mxu0 0.0
    %577 = vmatprep.subr.mxu0 0.0
    %578 = vmatpush1.msra.mxu0 0.0
    %579 = vmatprep.subr.mxu0 0.0
    %580 = vmatpush1.msra.mxu0 0.0
    %581 = vmatprep.mubr.f32.mxu0 0.0
    %582 = vmatmul.mubr.f32.gmra.mrb[0].mxu0 %v515
    %v583 = vpop.f32.mrb[0].mxu0
    %v584 = vadd.f32 0.0, %v583
    %v585 = vpop.f32.mrb[0].mxu0
    %586 = vdwg.mxu0
    %v588 = vsel %vm491, %v513, 0
    %590 = vmatprep.subr.mxu0 0.0
    %591 = vmatpush1.msra.mxu0 %v346
    %592 = vmatprep.subr.mxu0 0.0
    %593 = vmatpush1.msra.mxu0 0.0
    %594 = vmatprep.subr.mxu0 0.0
    %595 = vmatpush1.msra.mxu0 0.0
    %596 = vmatprep.subr.mxu0 0.0
    %597 = vmatpush1.msra.mxu0 0.0
    %598 = vmatprep.subr.mxu0 0.0
    %599 = vmatpush1.msra.mxu0 0.0
    %600 = vmatprep.subr.mxu0 0.0
    %601 = vmatpush1.msra.mxu0 0.0
    %602 = vmatprep.subr.mxu0 0.0
    %603 = vmatpush1.msra.mxu0 0.0
    %604 = vmatprep.subr.mxu0 0.0
    %605 = vmatpush1.msra.mxu0 0.0
    %606 = vmatprep.subr.mxu0 0.0
    %607 = vmatpush1.msra.mxu0 0.0
    %608 = vmatprep.subr.mxu0 0.0
    %609 = vmatpush1.msra.mxu0 0.0
    %610 = vmatprep.subr.mxu0 0.0
    %611 = vmatpush1.msra.mxu0 0.0
    %612 = vmatprep.subr.mxu0 0.0
    %613 = vmatpush1.msra.mxu0 0.0
    %614 = vmatprep.subr.mxu0 0.0
    %615 = vmatpush1.msra.mxu0 0.0
    %616 = vmatprep.subr.mxu0 0.0
    %617 = vmatpush1.msra.mxu0 0.0
    %618 = vmatprep.subr.mxu0 0.0
    %619 = vmatpush1.msra.mxu0 0.0
    %620 = vmatprep.subr.mxu0 0.0
    %621 = vmatpush1.msra.mxu0 0.0
    %622 = vmatprep.subr.mxu0 0.0
    %623 = vmatpush1.msra.mxu0 0.0
    %624 = vmatprep.subr.mxu0 0.0
    %625 = vmatpush1.msra.mxu0 0.0
    %626 = vmatprep.subr.mxu0 0.0
    %627 = vmatpush1.msra.mxu0 0.0
    %628 = vmatprep.subr.mxu0 0.0
    %629 = vmatpush1.msra.mxu0 0.0
    %630 = vmatprep.subr.mxu0 0.0
    %631 = vmatpush1.msra.mxu0 0.0
    %632 = vmatprep.subr.mxu0 0.0
    %633 = vmatpush1.msra.mxu0 0.0
    %634 = vmatprep.subr.mxu0 0.0
    %635 = vmatpush1.msra.mxu0 0.0
    %636 = vmatprep.subr.mxu0 0.0
    %637 = vmatpush1.msra.mxu0 0.0
    %638 = vmatprep.subr.mxu0 0.0
    %639 = vmatpush1.msra.mxu0 0.0
    %640 = vmatprep.subr.mxu0 0.0
    %641 = vmatpush1.msra.mxu0 0.0
    %642 = vmatprep.subr.mxu0 0.0
    %643 = vmatpush1.msra.mxu0 0.0
    %644 = vmatprep.subr.mxu0 0.0
    %645 = vmatpush1.msra.mxu0 0.0
    %646 = vmatprep.subr.mxu0 0.0
    %647 = vmatpush1.msra.mxu0 0.0
    %648 = vmatprep.subr.mxu0 0.0
    %649 = vmatpush1.msra.mxu0 0.0
    %650 = vmatprep.subr.mxu0 0.0
    %651 = vmatpush1.msra.mxu0 0.0
    %652 = vmatprep.subr.mxu0 0.0
    %653 = vmatpush1.msra.mxu0 0.0
    %654 = vmatprep.mubr.f32.mxu0 0.0
    %655 = vmatmul.mubr.f32.gmra.mrb[0].mxu0 %v588
    %v656 = vpop.f32.mrb[0].mxu0
    %v657 = vadd.f32 0.0, %v656
    %v658 = vpop.f32.mrb[0].mxu0
    %659 = vdwg.mxu0
    %660 = vst [vmem:[#allocation10] sm:$0xff] %v584
    %661 = vst [vmem:[#allocation10 + $0x8] sm:$0xff] %v657
    // Predicated region
    $region46: #{tpu_custom_call.1} parent=1 // pred_check
      _
    $region47: #{tpu_custom_call.1} parent=1 // pred_check_branch
      %663 = sbr.rel (0) target = $region49
    $region48: #{tpu_custom_call.1} parent=1 // pred_region
      %s665 = ssub.s32 256, 256
      %666 = vsyncadd [#allocation4], %s665
      %s667 = sshll.u32 [#allocation10], 4
      %s668 = int_to_ptr.vmem [resolvable:$true] %s667
      %673 = dma.vmem_to_hbm [thread:$0]  %s668, 256, %s7, [#allocation4], 128, 128, 8
    $region49: #{tpu_custom_call.1} parent=1 // pred_fallthru
      _
    // Predicated region
    $region50: #{tpu_custom_call.1} parent=1 // pred_check
      _
    $region51: #{tpu_custom_call.1} parent=1 // pred_check_branch
      %675 = sbr.rel (0) target = $region53
    $region52: #{tpu_custom_call.1} parent=1 // pred_region
      %676 = dma.done [#allocation4], 256
    $region53: #{tpu_custom_call.1} parent=1 // pred_fallthru
      _
    %677 = vsyncpa [#allocation3], 1
    %678 = vsyncpa [#allocation6], 1
    %679 = vsyncpa [#allocation9], 1
    %680 = vsyncpa [#allocation4], 1

</llo_original>
